<compile_context>
chip_gen: v5e
topology: v5e:2x2
jax: 0.10.0
libtpu: 0.0.40
codegen_flags: <defaults>
</compile_context>

<pallas_src>
import functools

import jax
import jax.numpy as jnp
from jax import lax
from jax.experimental import pallas as pl
from jax.experimental.pallas import tpu as pltpu


# ----------------------------------------------------------------------------
# Kernel 1: fused multi-head attention. grid = (batch, head)
#   batch axis: "parallel" (megacore); head axis: "arbitrary" reduction — the output
#   block index is constant over h, so the (1, S, D) f32 output block stays resident
#   in VMEM and accumulates each head's out-projection partial sum.
# ----------------------------------------------------------------------------
def mha_kernel(q_ref, k_ref, v_ref,
               wq_ref, wk_ref, wv_ref,
               bq_ref, bk_ref, bv_ref,
               wo_ref, bo_ref,
               o_ref, *, scale):
    f32 = jnp.float32
    bf16 = jnp.bfloat16
    h = pl.program_id(1)

    q = q_ref[0]                                   # (S, D)  bf16
    k = k_ref[0]
    v = v_ref[0]

    # per-head in-projections: (S, D) @ (D, dh) -> (S, dh), f32 accumulation
    qh = jnp.dot(q, wq_ref[0], preferred_element_type=f32) + bq_ref[0]
    kh = jnp.dot(k, wk_ref[0], preferred_element_type=f32) + bk_ref[0]
    vh = jnp.dot(v, wv_ref[0], preferred_element_type=f32) + bv_ref[0]

    # scores = qh @ kh^T  (contract last dims -> no explicit transpose)
    s = lax.dot_general(qh.astype(bf16), kh.astype(bf16),
                        (((1,), (1,)), ((), ())),
                        preferred_element_type=f32) * scale           # (S, S)
    s = s - jnp.max(s, axis=-1, keepdims=True)
    p = jnp.exp(s)
    # approx reciprocal goes to the EUP slot; ~1e-3 rel error (accepted trade-off)
    p = p * pl.reciprocal(jnp.sum(p, axis=-1, keepdims=True), approx=True)

    ctx = jnp.dot(p.astype(bf16), vh.astype(bf16),
                  preferred_element_type=f32)                         # (S, dh)
    # this head's slice of the out-projection: ctx_h @ Wo^T[h*dh:(h+1)*dh, :]
    contrib = jnp.dot(ctx.astype(bf16), wo_ref[0],
                      preferred_element_type=f32)                     # (S, D)

    @pl.when(h == 0)
    def _():
        o_ref[0] = contrib + bo_ref[...]

    @pl.when(h != 0)
    def _():
        o_ref[0] = o_ref[0] + contrib


# ----------------------------------------------------------------------------
# Kernel 2: mask-MLP gate + torch.where broadcast. grid = (B,) over the leading
#   output axis i; one lane-dense (B, S*D) slab is written per step.
#   local_output == full_output here (window_size >= seq_len), so the blend reduces
#   to a per-batch scalar coefficient:  c_i = where(m_i < 0.1, 1 - m_i, 1).
# ----------------------------------------------------------------------------
def combine_kernel(lastq_ref, mw_ref, mb_ref, full_ref, o_ref):
    logit = jnp.sum(lastq_ref[0] * mw_ref[...], axis=-1, keepdims=True) + mb_ref[...]
    m = 1.0 / (1.0 + jnp.exp(-logit))                       # (1, 1)  sigmoid
    coeff = jnp.where(m < 0.1, 1.0 - m, jnp.ones_like(m))   # (1, 1)
    o_ref[0] = coeff * full_ref[...]                        # (B, S*D) lane-dense store


# ----------------------------------------------------------------------------
# DuoAttention forward wrapper.  Returns (B, B, S, D), matching the PyTorch
# module's torch.where broadcast of a (B,1,1,1) mask against (B,S,D) outputs.
# ----------------------------------------------------------------------------
def duo_attention_forward(query, key, value, params, *, num_heads, window_size=128):
    (attn_params, mask_w, mask_b) = params
    wq, wk, wv, bq, bk, bv, wo, bo = attn_params
    B, S, D = query.shape
    H = num_heads
    dh = D // H

    if S > window_size:
        # The reference module's torch.where is shape-invalid in this regime
        # ((B,S,D) vs (B,window,D)), so it is not a meaningful configuration.
        # TODO(synk): no windowed-attention path, mirroring the upstream constraint.
        raise ValueError(
            f"DuoAttention requires window_size >= seq_len (got {window_size} < {S}).")

    f32, bf16 = jnp.float32, jnp.bfloat16

    # bf16 operands for the MXU; f32 accumulation happens inside the kernel.
    qb = query.astype(bf16)
    kb = key.astype(bf16)
    vb = value.astype(bf16)

    # Head-major, pre-transposed weights prepared once in the wrapper:
    #   x @ W^T == x @ W.T ; head h uses columns [h*dh, (h+1)*dh) of W.T
    wqt_h = wq.T.reshape(D, H, dh).transpose(1, 0, 2).astype(bf16)    # (H, D, dh)
    wkt_h = wk.T.reshape(D, H, dh).transpose(1, 0, 2).astype(bf16)
    wvt_h = wv.T.reshape(D, H, dh).transpose(1, 0, 2).astype(bf16)
    wot_h = wo.T.reshape(H, dh, D).astype(bf16)                       # (H, dh, D)
    bq_h = bq.reshape(H, 1, dh).astype(f32)
    bk_h = bk.reshape(H, 1, dh).astype(f32)
    bv_h = bv.reshape(H, 1, dh).astype(f32)

    batch_x = pl.BlockSpec((1, S, D), lambda b, h: (b, 0, 0))
    head_w = pl.BlockSpec((1, D, dh), lambda b, h: (h, 0, 0))
    head_b = pl.BlockSpec((1, 1, dh), lambda b, h: (h, 0, 0))

    # ---- kernel 1: full multi-head attention ---------------------------------
    full = pl.pallas_call(
        functools.partial(mha_kernel, scale=dh ** -0.5),
        out_shape=jax.ShapeDtypeStruct((B, S, D), f32),
        grid_spec=pltpu.PrefetchScalarGridSpec(
            num_scalar_prefetch=0,
            grid=(B, H),
            in_specs=[batch_x, batch_x, batch_x,
                      head_w, head_w, head_w,
                      head_b, head_b, head_b,
                      pl.BlockSpec((1, dh, D), lambda b, h: (h, 0, 0)),   # Wo^T per head
                      pl.BlockSpec((1, D), lambda b, h: (0, 0))],         # bo (resident)
            out_specs=pl.BlockSpec((1, S, D), lambda b, h: (b, 0, 0)),
        ),
        compiler_params=pltpu.CompilerParams(
            dimension_semantics=("parallel", "arbitrary"),
            vmem_limit_bytes=32 * 1024 * 1024),
    )(qb, kb, vb, wqt_h, wkt_h, wvt_h, bq_h, bk_h, bv_h, wot_h, bo)

    # ---- kernel 2: gate + broadcast combine -----------------------------------
    last_query = query[:, -1].reshape(B, 1, D).astype(f32)   # mask MLP on f32 query
    full2 = full.reshape(B, S * D)                            # free reshape -> lane-dense slab
    mb2 = mask_b.reshape(1, 1).astype(f32)

    out = pl.pallas_call(
        combine_kernel,
        out_shape=jax.ShapeDtypeStruct((B, B, S * D), f32),
        grid_spec=pltpu.PrefetchScalarGridSpec(
            num_scalar_prefetch=0,
            grid=(B,),
            in_specs=[pl.BlockSpec((1, 1, D), lambda i: (i, 0, 0)),     # query[:, -1] row i
                      pl.BlockSpec((1, D), lambda i: (0, 0)),           # mask MLP weight
                      pl.BlockSpec((1, 1), lambda i: (0, 0)),           # mask MLP bias
                      pl.BlockSpec((B, S * D), lambda i: (0, 0))],      # full slab (resident)
            out_specs=pl.BlockSpec((1, B, S * D), lambda i: (i, 0, 0)),
        ),
        compiler_params=pltpu.CompilerParams(
            dimension_semantics=("parallel",),
            vmem_limit_bytes=32 * 1024 * 1024),
    )(last_query, mask_w, mb2, full2)

    return out.reshape(B, B, S, D)


# ----------------------------------------------------------------------------
# Pure-JAX reference (mirrors the PyTorch math) for a correctness sanity check
# ----------------------------------------------------------------------------
def mha_ref(q, k, v, params, num_heads):
    wq, wk, wv, bq, bk, bv, wo, bo = params
    B, S, D = q.shape
    dh = D // num_heads
    qp = q @ wq.T + bq[0]
    kp = k @ wk.T + bk[0]
    vp = v @ wv.T + bv[0]
    qp = qp.reshape(B, S, num_heads, dh).transpose(0, 2, 1, 3)
    kp = kp.reshape(B, S, num_heads, dh).transpose(0, 2, 1, 3)
    vp = vp.reshape(B, S, num_heads, dh).transpose(0, 2, 1, 3)
    s = jnp.einsum("bhqd,bhkd->bhqk", qp, kp) * (dh ** -0.5)
    p = jax.nn.softmax(s, axis=-1)
    ctx = jnp.einsum("bhqk,bhkd->bhqd", p, vp).transpose(0, 2, 1, 3).reshape(B, S, D)
    return ctx @ wo.T + bo[0]


def duo_ref(query, key, value, params, *, num_heads, window_size=128):
    (attn_params, mask_w, mask_b) = params
    B, S, D = query.shape
    mc = jax.nn.sigmoid(query[:, -1] @ mask_w.T + mask_b)       # (B, 1)
    full = mha_ref(query, key, value, attn_params, num_heads)
    start = max(0, S - window_size)
    local = mha_ref(query[:, start:S], key[:, start:S], value[:, start:S],
                    attn_params, num_heads)
    mc4 = mc[:, None, None]                                     # (B, 1, 1, 1)
    return jnp.where(mc4 < 0.1, (1 - mc4) * local, mc4 * full + (1 - mc4) * local)


# ----------------------------------------------------------------------------
if __name__ == "__main__":
    B, S, D, H = 2, 8, 32, 4
    window_size = 128

    key = jax.random.PRNGKey(0)
    ks = jax.random.split(key, 16)

    scale = 0.1
    wq = scale * jax.random.normal(ks[0], (D, D), jnp.float32)
    wk = scale * jax.random.normal(ks[1], (D, D), jnp.float32)
    wv = scale * jax.random.normal(ks[2], (D, D), jnp.float32)
    bq = scale * jax.random.normal(ks[3], (1, D), jnp.float32)
    bk = scale * jax.random.normal(ks[4], (1, D), jnp.float32)
    bv = scale * jax.random.normal(ks[5], (1, D), jnp.float32)
    wo = scale * jax.random.normal(ks[6], (D, D), jnp.float32)
    bo = scale * jax.random.normal(ks[7], (1, D), jnp.float32)
    mask_w = scale * jax.random.normal(ks[8], (1, D), jnp.float32)   # Linear(D, 1) weight
    mask_b = scale * jax.random.normal(ks[9], (1,), jnp.float32)

    attn_params = (wq, wk, wv, bq, bk, bv, wo, bo)
    params = (attn_params, mask_w, mask_b)

    query = jax.random.normal(ks[10], (B, S, D), jnp.float32)
    key_in = jax.random.normal(ks[11], (B, S, D), jnp.float32)
    value = jax.random.normal(ks[12], (B, S, D), jnp.float32)

    out = duo_attention_forward(query, key_in, value, params,
                                num_heads=H, window_size=window_size)
    out = jax.block_until_ready(out)

    assert out.shape == (B, B, S, D), out.shape

    ref = duo_ref(query, key_in, value, params, num_heads=H, window_size=window_size)
    err = float(jnp.max(jnp.abs(out - ref)))
    assert jnp.allclose(out, ref, atol=2e-2, rtol=2e-2), err

    print("KERNEL_OK")
</pallas_src>

<mosaic_0001>
module attributes {stable_mosaic.version = 11 : i64} {
  func.func @mha_kernel(%arg0: i32, %arg1: i32, %arg2: memref<1x8x32xbf16, #tpu.memory_space<vmem>>, %arg3: memref<1x8x32xbf16, #tpu.memory_space<vmem>>, %arg4: memref<1x8x32xbf16, #tpu.memory_space<vmem>>, %arg5: memref<1x32x8xbf16, #tpu.memory_space<vmem>>, %arg6: memref<1x32x8xbf16, #tpu.memory_space<vmem>>, %arg7: memref<1x32x8xbf16, #tpu.memory_space<vmem>>, %arg8: memref<1x1x8xf32, #tpu.memory_space<vmem>>, %arg9: memref<1x1x8xf32, #tpu.memory_space<vmem>>, %arg10: memref<1x1x8xf32, #tpu.memory_space<vmem>>, %arg11: memref<1x8x32xbf16, #tpu.memory_space<vmem>>, %arg12: memref<1x32xf32, #tpu.memory_space<vmem>>, %arg13: memref<1x8x32xf32, #tpu.memory_space<vmem>>) attributes {dimension_semantics = [#tpu.dimension_semantics<parallel>, #tpu.dimension_semantics<arbitrary>], iteration_bounds = array<i64: 2, 4>, scalar_prefetch = 0 : i64, scratch_operands = 0 : i64, tpu.core_type = #tpu.core_type<tc>, window_params = [{transform_indices = @transform_0, window_bounds = array<i64: 1, 8, 32>}, {transform_indices = @transform_1, window_bounds = array<i64: 1, 8, 32>}, {transform_indices = @transform_2, window_bounds = array<i64: 1, 8, 32>}, {transform_indices = @transform_3, window_bounds = array<i64: 1, 32, 8>}, {transform_indices = @transform_4, window_bounds = array<i64: 1, 32, 8>}, {transform_indices = @transform_5, window_bounds = array<i64: 1, 32, 8>}, {transform_indices = @transform_6, window_bounds = array<i64: 1, 1, 8>}, {transform_indices = @transform_7, window_bounds = array<i64: 1, 1, 8>}, {transform_indices = @transform_8, window_bounds = array<i64: 1, 1, 8>}, {transform_indices = @transform_9, window_bounds = array<i64: 1, 8, 32>}, {pipeline_mode = #tpu.pipeline_mode<synchronous>, transform_indices = @transform_10, window_bounds = array<i64: 1, 32>}, {transform_indices = @transform_11, window_bounds = array<i64: 1, 8, 32>}]} {
    %c0 = arith.constant 0 : index
    %c0_0 = arith.constant 0 : index
    %c0_1 = arith.constant 0 : index
    %0 = vector.load %arg2[%c0, %c0_0, %c0_1] : memref<1x8x32xbf16, #tpu.memory_space<vmem>>, vector<1x8x32xbf16>
    %1 = vector.shape_cast %0 : vector<1x8x32xbf16> to vector<8x32xbf16>
    %c0_2 = arith.constant 0 : index
    %c0_3 = arith.constant 0 : index
    %c0_4 = arith.constant 0 : index
    %2 = vector.load %arg3[%c0_2, %c0_3, %c0_4] : memref<1x8x32xbf16, #tpu.memory_space<vmem>>, vector<1x8x32xbf16>
    %3 = vector.shape_cast %2 : vector<1x8x32xbf16> to vector<8x32xbf16>
    %c0_5 = arith.constant 0 : index
    %c0_6 = arith.constant 0 : index
    %c0_7 = arith.constant 0 : index
    %4 = vector.load %arg4[%c0_5, %c0_6, %c0_7] : memref<1x8x32xbf16, #tpu.memory_space<vmem>>, vector<1x8x32xbf16>
    %5 = vector.shape_cast %4 : vector<1x8x32xbf16> to vector<8x32xbf16>
    %c0_8 = arith.constant 0 : index
    %c0_9 = arith.constant 0 : index
    %c0_10 = arith.constant 0 : index
    %6 = vector.load %arg5[%c0_8, %c0_9, %c0_10] : memref<1x32x8xbf16, #tpu.memory_space<vmem>>, vector<1x32x8xbf16>
    %7 = vector.shape_cast %6 : vector<1x32x8xbf16> to vector<32x8xbf16>
    %cst = arith.constant dense<0.000000e+00> : vector<8x8xf32>
    %8 = tpu.matmul %1, %7, %cst {dimension_numbers = #tpu.dot_dimension_numbers<[1], [0], [0], [1], [0, 0, 1, 1], [], []>} : vector<8x32xbf16>, vector<32x8xbf16>, vector<8x8xf32> -> vector<8x8xf32>
    %c0_11 = arith.constant 0 : index
    %c0_12 = arith.constant 0 : index
    %c0_13 = arith.constant 0 : index
    %9 = vector.load %arg8[%c0_11, %c0_12, %c0_13] : memref<1x1x8xf32, #tpu.memory_space<vmem>>, vector<1x1x8xf32>
    %10 = vector.shape_cast %9 : vector<1x1x8xf32> to vector<1x8xf32>
    %11 = vector.broadcast %10 : vector<1x8xf32> to vector<8x8xf32>
    %12 = arith.addf %8, %11 : vector<8x8xf32>
    %c0_14 = arith.constant 0 : index
    %c0_15 = arith.constant 0 : index
    %c0_16 = arith.constant 0 : index
    %13 = vector.load %arg6[%c0_14, %c0_15, %c0_16] : memref<1x32x8xbf16, #tpu.memory_space<vmem>>, vector<1x32x8xbf16>
    %14 = vector.shape_cast %13 : vector<1x32x8xbf16> to vector<32x8xbf16>
    %cst_17 = arith.constant dense<0.000000e+00> : vector<8x8xf32>
    %15 = tpu.matmul %3, %14, %cst_17 {dimension_numbers = #tpu.dot_dimension_numbers<[1], [0], [0], [1], [0, 0, 1, 1], [], []>} : vector<8x32xbf16>, vector<32x8xbf16>, vector<8x8xf32> -> vector<8x8xf32>
    %c0_18 = arith.constant 0 : index
    %c0_19 = arith.constant 0 : index
    %c0_20 = arith.constant 0 : index
    %16 = vector.load %arg9[%c0_18, %c0_19, %c0_20] : memref<1x1x8xf32, #tpu.memory_space<vmem>>, vector<1x1x8xf32>
    %17 = vector.shape_cast %16 : vector<1x1x8xf32> to vector<1x8xf32>
    %18 = vector.broadcast %17 : vector<1x8xf32> to vector<8x8xf32>
    %19 = arith.addf %15, %18 : vector<8x8xf32>
    %c0_21 = arith.constant 0 : index
    %c0_22 = arith.constant 0 : index
    %c0_23 = arith.constant 0 : index
    %20 = vector.load %arg7[%c0_21, %c0_22, %c0_23] : memref<1x32x8xbf16, #tpu.memory_space<vmem>>, vector<1x32x8xbf16>
    %21 = vector.shape_cast %20 : vector<1x32x8xbf16> to vector<32x8xbf16>
    %cst_24 = arith.constant dense<0.000000e+00> : vector<8x8xf32>
    %22 = tpu.matmul %5, %21, %cst_24 {dimension_numbers = #tpu.dot_dimension_numbers<[1], [0], [0], [1], [0, 0, 1, 1], [], []>} : vector<8x32xbf16>, vector<32x8xbf16>, vector<8x8xf32> -> vector<8x8xf32>
    %c0_25 = arith.constant 0 : index
    %c0_26 = arith.constant 0 : index
    %c0_27 = arith.constant 0 : index
    %23 = vector.load %arg10[%c0_25, %c0_26, %c0_27] : memref<1x1x8xf32, #tpu.memory_space<vmem>>, vector<1x1x8xf32>
    %24 = vector.shape_cast %23 : vector<1x1x8xf32> to vector<1x8xf32>
    %25 = vector.broadcast %24 : vector<1x8xf32> to vector<8x8xf32>
    %26 = arith.addf %22, %25 : vector<8x8xf32>
    %27 = arith.truncf %12 : vector<8x8xf32> to vector<8x8xbf16>
    %28 = arith.truncf %19 : vector<8x8xf32> to vector<8x8xbf16>
    %cst_28 = arith.constant dense<0.000000e+00> : vector<8x8xf32>
    %29 = tpu.matmul %27, %28, %cst_28 {dimension_numbers = #tpu.dot_dimension_numbers<[1], [1], [0], [0], [0, 0, 1, 0], [], []>} : vector<8x8xbf16>, vector<8x8xbf16>, vector<8x8xf32> -> vector<8x8xf32>
    %cst_29 = arith.constant 0.353553385 : f32
    %30 = vector.broadcast %cst_29 : f32 to vector<8x8xf32>
    %31 = arith.mulf %29, %30 : vector<8x8xf32>
    %cst_30 = arith.constant dense<0xFF800000> : vector<8xf32>
    %32 = vector.multi_reduction <maximumf>, %31, %cst_30 [1] : vector<8x8xf32> to vector<8xf32>
    %33 = vector.shape_cast %32 : vector<8xf32> to vector<8x1xf32>
    %34 = vector.broadcast %33 : vector<8x1xf32> to vector<8x8xf32>
    %35 = arith.subf %31, %34 : vector<8x8xf32>
    %36 = math.exp %35 : vector<8x8xf32>
    %cst_31 = arith.constant dense<0.000000e+00> : vector<8xf32>
    %37 = vector.multi_reduction <add>, %36, %cst_31 [1] : vector<8x8xf32> to vector<8xf32>
    %38 = vector.shape_cast %37 : vector<8xf32> to vector<8x1xf32>
    %39 = tpu.reciprocal %38 {approx = true} : vector<8x1xf32> -> vector<8x1xf32>
    %40 = vector.broadcast %39 : vector<8x1xf32> to vector<8x8xf32>
    %41 = arith.mulf %36, %40 : vector<8x8xf32>
    %42 = arith.truncf %41 : vector<8x8xf32> to vector<8x8xbf16>
    %43 = arith.truncf %26 : vector<8x8xf32> to vector<8x8xbf16>
    %cst_32 = arith.constant dense<0.000000e+00> : vector<8x8xf32>
    %44 = tpu.matmul %42, %43, %cst_32 {dimension_numbers = #tpu.dot_dimension_numbers<[1], [0], [0], [1], [0, 0, 1, 1], [], []>} : vector<8x8xbf16>, vector<8x8xbf16>, vector<8x8xf32> -> vector<8x8xf32>
    %45 = arith.truncf %44 : vector<8x8xf32> to vector<8x8xbf16>
    %c0_33 = arith.constant 0 : index
    %c0_34 = arith.constant 0 : index
    %c0_35 = arith.constant 0 : index
    %46 = vector.load %arg11[%c0_33, %c0_34, %c0_35] : memref<1x8x32xbf16, #tpu.memory_space<vmem>>, vector<1x8x32xbf16>
    %47 = vector.shape_cast %46 : vector<1x8x32xbf16> to vector<8x32xbf16>
    %cst_36 = arith.constant dense<0.000000e+00> : vector<8x32xf32>
    %48 = tpu.matmul %45, %47, %cst_36 {dimension_numbers = #tpu.dot_dimension_numbers<[1], [0], [0], [1], [0, 0, 1, 1], [], []>} : vector<8x8xbf16>, vector<8x32xbf16>, vector<8x32xf32> -> vector<8x32xf32>
    %c0_i32 = arith.constant 0 : i32
    %49 = arith.cmpi eq, %arg1, %c0_i32 : i32
    %50 = arith.extui %49 : i1 to i32
    %c0_i32_37 = arith.constant 0 : i32
    %51 = arith.cmpi ne, %50, %c0_i32_37 : i32
    scf.if %51 {
      %c0_40 = arith.constant 0 : index
      %c0_41 = arith.constant 0 : index
      %55 = vector.load %arg12[%c0_40, %c0_41] : memref<1x32xf32, #tpu.memory_space<vmem>>, vector<1x32xf32>
      %56 = vector.broadcast %55 : vector<1x32xf32> to vector<8x32xf32>
      %57 = arith.addf %48, %56 : vector<8x32xf32>
      %c0_42 = arith.constant 0 : index
      %c0_43 = arith.constant 0 : index
      %c0_44 = arith.constant 0 : index
      %58 = vector.load %arg13[%c0_42, %c0_43, %c0_44] : memref<1x8x32xf32, #tpu.memory_space<vmem>>, vector<1x8x32xf32>
      %59 = vector.shape_cast %58 : vector<1x8x32xf32> to vector<8x32xf32>
      %60 = vector.shape_cast %57 : vector<8x32xf32> to vector<1x8x32xf32>
      tpu.vector_store %arg13[%c0_42, %c0_43, %c0_44], %60 {strides = array<i32>} : memref<1x8x32xf32, #tpu.memory_space<vmem>>, vector<1x8x32xf32>,
    } else {
    }
    %c0_i32_38 = arith.constant 0 : i32
    %52 = arith.cmpi ne, %arg1, %c0_i32_38 : i32
    %53 = arith.extui %52 : i1 to i32
    %c0_i32_39 = arith.constant 0 : i32
    %54 = arith.cmpi ne, %53, %c0_i32_39 : i32
    scf.if %54 {
      %c0_40 = arith.constant 0 : index
      %c0_41 = arith.constant 0 : index
      %c0_42 = arith.constant 0 : index
      %55 = vector.load %arg13[%c0_40, %c0_41, %c0_42] : memref<1x8x32xf32, #tpu.memory_space<vmem>>, vector<1x8x32xf32>
      %56 = vector.shape_cast %55 : vector<1x8x32xf32> to vector<8x32xf32>
      %57 = arith.addf %56, %48 : vector<8x32xf32>
      %c0_43 = arith.constant 0 : index
      %c0_44 = arith.constant 0 : index
      %c0_45 = arith.constant 0 : index
      %58 = vector.load %arg13[%c0_43, %c0_44, %c0_45] : memref<1x8x32xf32, #tpu.memory_space<vmem>>, vector<1x8x32xf32>
      %59 = vector.shape_cast %58 : vector<1x8x32xf32> to vector<8x32xf32>
      %60 = vector.shape_cast %57 : vector<8x32xf32> to vector<1x8x32xf32>
      tpu.vector_store %arg13[%c0_43, %c0_44, %c0_45], %60 {strides = array<i32>} : memref<1x8x32xf32, #tpu.memory_space<vmem>>, vector<1x8x32xf32>,
    } else {
    }
    return
  }
  func.func @transform_0(%arg0: i32, %arg1: i32) -> (i32, i32, i32) {
    %c0_i32 = arith.constant 0 : i32
    %c0_i32_0 = arith.constant 0 : i32
    %c0_i32_1 = arith.constant 0 : i32
    return %arg0, %c0_i32, %c0_i32_0 : i32, i32, i32
  }
  func.func @transform_1(%arg0: i32, %arg1: i32) -> (i32, i32, i32) {
    %c0_i32 = arith.constant 0 : i32
    %c0_i32_0 = arith.constant 0 : i32
    %c0_i32_1 = arith.constant 0 : i32
    return %arg0, %c0_i32, %c0_i32_0 : i32, i32, i32
  }
  func.func @transform_2(%arg0: i32, %arg1: i32) -> (i32, i32, i32) {
    %c0_i32 = arith.constant 0 : i32
    %c0_i32_0 = arith.constant 0 : i32
    %c0_i32_1 = arith.constant 0 : i32
    return %arg0, %c0_i32, %c0_i32_0 : i32, i32, i32
  }
  func.func @transform_3(%arg0: i32, %arg1: i32) -> (i32, i32, i32) {
    %c0_i32 = arith.constant 0 : i32
    %c0_i32_0 = arith.constant 0 : i32
    %c0_i32_1 = arith.constant 0 : i32
    return %arg1, %c0_i32, %c0_i32_0 : i32, i32, i32
  }
  func.func @transform_4(%arg0: i32, %arg1: i32) -> (i32, i32, i32) {
    %c0_i32 = arith.constant 0 : i32
    %c0_i32_0 = arith.constant 0 : i32
    %c0_i32_1 = arith.constant 0 : i32
    return %arg1, %c0_i32, %c0_i32_0 : i32, i32, i32
  }
  func.func @transform_5(%arg0: i32, %arg1: i32) -> (i32, i32, i32) {
    %c0_i32 = arith.constant 0 : i32
    %c0_i32_0 = arith.constant 0 : i32
    %c0_i32_1 = arith.constant 0 : i32
    return %arg1, %c0_i32, %c0_i32_0 : i32, i32, i32
  }
  func.func @transform_6(%arg0: i32, %arg1: i32) -> (i32, i32, i32) {
    %c0_i32 = arith.constant 0 : i32
    %c0_i32_0 = arith.constant 0 : i32
    %c0_i32_1 = arith.constant 0 : i32
    return %arg1, %c0_i32, %c0_i32_0 : i32, i32, i32
  }
  func.func @transform_7(%arg0: i32, %arg1: i32) -> (i32, i32, i32) {
    %c0_i32 = arith.constant 0 : i32
    %c0_i32_0 = arith.constant 0 : i32
    %c0_i32_1 = arith.constant 0 : i32
    return %arg1, %c0_i32, %c0_i32_0 : i32, i32, i32
  }
  func.func @transform_8(%arg0: i32, %arg1: i32) -> (i32, i32, i32) {
    %c0_i32 = arith.constant 0 : i32
    %c0_i32_0 = arith.constant 0 : i32
    %c0_i32_1 = arith.constant 0 : i32
    return %arg1, %c0_i32, %c0_i32_0 : i32, i32, i32
  }
  func.func @transform_9(%arg0: i32, %arg1: i32) -> (i32, i32, i32) {
    %c0_i32 = arith.constant 0 : i32
    %c0_i32_0 = arith.constant 0 : i32
    %c0_i32_1 = arith.constant 0 : i32
    return %arg1, %c0_i32, %c0_i32_0 : i32, i32, i32
  }
  func.func @transform_10(%arg0: i32, %arg1: i32) -> (i32, i32) {
    %c0_i32 = arith.constant 0 : i32
    %c0_i32_0 = arith.constant 0 : i32
    %c0_i32_1 = arith.constant 0 : i32
    return %c0_i32, %c0_i32_0 : i32, i32
  }
  func.func @transform_11(%arg0: i32, %arg1: i32) -> (i32, i32, i32) {
    %c0_i32 = arith.constant 0 : i32
    %c0_i32_0 = arith.constant 0 : i32
    %c0_i32_1 = arith.constant 0 : i32
    return %arg0, %c0_i32, %c0_i32_0 : i32, i32, i32
  }
}

</mosaic_0001>

<llo_original>
// kernel: tpu_custom_call.1
$region0: #{tpu_custom_call.1}
  #allocation0 [shape = 'u32[]', space=smem, size = 0x4, offset = 0x4, fixed_abs, tag = 'smem constant byte address 0x4 - core index']
  #allocation1 [shape = 'u32[72,128]{1,0:T(1,128)}', space=vmem, size = 0x9000, scoped, tag = 'internal scratch']
  %s0 = inlined_call_operand.vmem [shape: bf16[2,8,32], index: 0, kind: input, shape index: {}]
  %s1 = inlined_call_operand.vmem [shape: bf16[2,8,32], index: 1, kind: input, shape index: {}]
  %s2 = inlined_call_operand.vmem [shape: bf16[2,8,32], index: 2, kind: input, shape index: {}]
  %s3 = inlined_call_operand.vmem [shape: bf16[4,32,8], index: 3, kind: input, shape index: {}]
  %s4 = inlined_call_operand.vmem [shape: bf16[4,32,8], index: 4, kind: input, shape index: {}]
  %s5 = inlined_call_operand.vmem [shape: bf16[4,32,8], index: 5, kind: input, shape index: {}]
  %s6 = inlined_call_operand.vmem [shape: f32[4,1,8], index: 6, kind: input, shape index: {}]
  %s7 = inlined_call_operand.vmem [shape: f32[4,1,8], index: 7, kind: input, shape index: {}]
  %s8 = inlined_call_operand.vmem [shape: f32[4,1,8], index: 8, kind: input, shape index: {}]
  %s9 = inlined_call_operand.vmem [shape: bf16[4,8,32], index: 9, kind: input, shape index: {}]
  %s10 = inlined_call_operand.vmem [shape: f32[1,32], index: 10, kind: input, shape index: {}]
  %s11 = inlined_call_operand.hbm [shape: f32[2,8,32], index: 11, kind: output, shape index: {}]
  %s12 = sld [smem:[#allocation0]]
  $region85: #{tpu_custom_call.1} parent=0
    _
  %s14 = ssub.s32 1, %s12
  %s15 = scalar_select 0, %s14, %s12
  $region1: #{tpu_custom_call.1} parent=0
    #allocation2 [shape = 'u8[8192]{0}', space=vmem, size = 0x2000, scoped, tag = 'output window, operand 0']
    #allocation3 [shape = 's32[2]{0}', space=sflag, size = 0x8, scoped, tag = 'scoped memory for tpu_custom_call.1']
    %16 = vsyncpa [#allocation3], 0
    %s17 = scalar_lea.sflag [#allocation3], 1
    %18 = vsyncpa %s17, 0
    loop: start=0, step=1, limit=10
    $region2: #{tpu_custom_call.1} parent=1 // loop_pre_header
      _
    $region3: #{tpu_custom_call.1} parent=1 // loop_header
      %s20 = sphi 0, %s24
      %p21 = scmp.ge.s32.totalorder %s20, 10
      %s27 = sphi 0, %s39
      %s28 = sphi 0, %s35
      %s29 = sphi 0, %s27
      %s30 = sphi 0, %s28
      %s31 = sphi 0, %s29
      %s32 = sphi 0, %s30
      %s42 = sphi 0, %s44
      %s45 = sphi 0, %s42
      %s46 = sphi 0, %s45
      %s62 = sphi 0, %s46
      %s68 = sphi 0, %s70
      %s71 = sphi 0, %s68
      %s72 = sphi 0, %s71
      %s88 = sphi 0, %s72
      %s94 = sphi 0, %s96
      %s97 = sphi 0, %s94
      %s98 = sphi 0, %s97
      %s114 = sphi 0, %s98
      %s120 = sphi 0, %s122
      %s123 = sphi 0, %s120
      %s124 = sphi 0, %s123
      %s140 = sphi 0, %s124
      %s146 = sphi 0, %s148
      %s149 = sphi 0, %s146
      %s150 = sphi 0, %s149
      %s166 = sphi 0, %s150
      %s172 = sphi 0, %s174
      %s175 = sphi 0, %s172
      %s176 = sphi 0, %s175
      %s192 = sphi 0, %s176
      %s198 = sphi 0, %s200
      %s201 = sphi 0, %s198
      %s202 = sphi 0, %s201
      %s218 = sphi 0, %s202
      %s224 = sphi 0, %s226
      %s227 = sphi 0, %s224
      %s228 = sphi 0, %s227
      %s244 = sphi 0, %s228
      %s250 = sphi 0, %s252
      %s253 = sphi 0, %s250
      %s254 = sphi 0, %s253
      %s270 = sphi 0, %s254
      %s276 = sphi 0, %s278
      %s279 = sphi 0, %s276
      %s280 = sphi 0, %s279
      %s296 = sphi 0, %s280
      %s300 = sphi 0, %s300
      %s302 = sphi 0, %s300
      %s303 = sphi 0, %s302
      %s317 = sphi 0, %s303
      %s323 = sphi 0, %s325
      %s326 = sphi 0, %s323
      %s327 = sphi 0, %s326
      %s343 = sphi 0, %s327
    $region4: #{tpu_custom_call.1} parent=1 // loop_header_branch
      %23 = sbr.rel (%p21) target = $region8
    $region5: #{tpu_custom_call.1} parent=1 // loop_body
      %s25 = ssub.s32 %s20, 1
      %s26 = ssub.s32 %s20, 2
      %s33 = sadd.s32 1, %s28
      %p34 = scmp.ge.s32.totalorder %s33, 4
      %s35 = scalar_select %p34, 0, %s33
      %s36 = sadd.s32 1, %s27
      %s37 = scalar_select %p34, %s36, %s27
      %p38 = scmp.ge.s32.totalorder %s37, 2
      %s39 = scalar_select %p38, 0, %s37
      %s40 = ssub.s32 %s27, %s39
      %p41 = scmp.eq.s32.totalorder %s40, 0
      %s43 = sadd.s32 %s42, 1
      %s44 = scalar_select %p41, %s42, %s43
      %p47 = pneg %p41
      %p48 = scmp.eq.s32.totalorder %s20, 7
      %p49 = por %p47, %p48
      %p50 = scmp.ne.s32.totalorder %s42, %s45
      %p51 = scmp.eq.s32.totalorder %s20, 0
      %p52 = por %p50, %p51
      %p53 = scmp.ne.s32.totalorder %s42, %s45
      %p54 = scmp.eq.s32.totalorder %s25, 7
      %p55 = por %p53, %p54
      %p56 = scmp.ne.s32.totalorder %s45, %s46
      %p57 = scmp.eq.s32.totalorder %s25, 0
      %p58 = por %p56, %p57
      %p59 = scmp.ne.s32.totalorder %s45, %s46
      %p60 = scmp.eq.s32.totalorder %s26, 7
      %p61 = por %p59, %p60
      %p63 = scmp.ne.s32.totalorder %s46, %s62
      %p64 = scmp.eq.s32.totalorder %s26, 0
      %p65 = por %p63, %p64
      %s66 = ssub.s32 %s27, %s39
      %p67 = scmp.eq.s32.totalorder %s66, 0
      %s69 = sadd.s32 %s68, 1
      %s70 = scalar_select %p67, %s68, %s69
      %p73 = pneg %p67
      %p74 = scmp.eq.s32.totalorder %s20, 7
      %p75 = por %p73, %p74
      %p76 = scmp.ne.s32.totalorder %s68, %s71
      %p77 = scmp.eq.s32.totalorder %s20, 0
      %p78 = por %p76, %p77
      %p79 = scmp.ne.s32.totalorder %s68, %s71
      %p80 = scmp.eq.s32.totalorder %s25, 7
      %p81 = por %p79, %p80
      %p82 = scmp.ne.s32.totalorder %s71, %s72
      %p83 = scmp.eq.s32.totalorder %s25, 0
      %p84 = por %p82, %p83
      %p85 = scmp.ne.s32.totalorder %s71, %s72
      %p86 = scmp.eq.s32.totalorder %s26, 7
      %p87 = por %p85, %p86
      %p89 = scmp.ne.s32.totalorder %s72, %s88
      %p90 = scmp.eq.s32.totalorder %s26, 0
      %p91 = por %p89, %p90
      %s92 = ssub.s32 %s27, %s39
      %p93 = scmp.eq.s32.totalorder %s92, 0
      %s95 = sadd.s32 %s94, 1
      %s96 = scalar_select %p93, %s94, %s95
      %p99 = pneg %p93
      %p100 = scmp.eq.s32.totalorder %s20, 7
      %p101 = por %p99, %p100
      %p102 = scmp.ne.s32.totalorder %s94, %s97
      %p103 = scmp.eq.s32.totalorder %s20, 0
      %p104 = por %p102, %p103
      %p105 = scmp.ne.s32.totalorder %s94, %s97
      %p106 = scmp.eq.s32.totalorder %s25, 7
      %p107 = por %p105, %p106
      %p108 = scmp.ne.s32.totalorder %s97, %s98
      %p109 = scmp.eq.s32.totalorder %s25, 0
      %p110 = por %p108, %p109
      %p111 = scmp.ne.s32.totalorder %s97, %s98
      %p112 = scmp.eq.s32.totalorder %s26, 7
      %p113 = por %p111, %p112
      %p115 = scmp.ne.s32.totalorder %s98, %s114
      %p116 = scmp.eq.s32.totalorder %s26, 0
      %p117 = por %p115, %p116
      %s118 = ssub.s32 %s28, %s35
      %p119 = scmp.eq.s32.totalorder %s118, 0
      %s121 = sadd.s32 %s120, 1
      %s122 = scalar_select %p119, %s120, %s121
      %p125 = pneg %p119
      %p126 = scmp.eq.s32.totalorder %s20, 7
      %p127 = por %p125, %p126
      %p128 = scmp.ne.s32.totalorder %s120, %s123
      %p129 = scmp.eq.s32.totalorder %s20, 0
      %p130 = por %p128, %p129
      %p131 = scmp.ne.s32.totalorder %s120, %s123
      %p132 = scmp.eq.s32.totalorder %s25, 7
      %p133 = por %p131, %p132
      %p134 = scmp.ne.s32.totalorder %s123, %s124
      %p135 = scmp.eq.s32.totalorder %s25, 0
      %p136 = por %p134, %p135
      %p137 = scmp.ne.s32.totalorder %s123, %s124
      %p138 = scmp.eq.s32.totalorder %s26, 7
      %p139 = por %p137, %p138
      %p141 = scmp.ne.s32.totalorder %s124, %s140
      %p142 = scmp.eq.s32.totalorder %s26, 0
      %p143 = por %p141, %p142
      %s144 = ssub.s32 %s28, %s35
      %p145 = scmp.eq.s32.totalorder %s144, 0
      %s147 = sadd.s32 %s146, 1
      %s148 = scalar_select %p145, %s146, %s147
      %p151 = pneg %p145
      %p152 = scmp.eq.s32.totalorder %s20, 7
      %p153 = por %p151, %p152
      %p154 = scmp.ne.s32.totalorder %s146, %s149
      %p155 = scmp.eq.s32.totalorder %s20, 0
      %p156 = por %p154, %p155
      %p157 = scmp.ne.s32.totalorder %s146, %s149
      %p158 = scmp.eq.s32.totalorder %s25, 7
      %p159 = por %p157, %p158
      %p160 = scmp.ne.s32.totalorder %s149, %s150
      %p161 = scmp.eq.s32.totalorder %s25, 0
      %p162 = por %p160, %p161
      %p163 = scmp.ne.s32.totalorder %s149, %s150
      %p164 = scmp.eq.s32.totalorder %s26, 7
      %p165 = por %p163, %p164
      %p167 = scmp.ne.s32.totalorder %s150, %s166
      %p168 = scmp.eq.s32.totalorder %s26, 0
      %p169 = por %p167, %p168
      %s170 = ssub.s32 %s28, %s35
      %p171 = scmp.eq.s32.totalorder %s170, 0
      %s173 = sadd.s32 %s172, 1
      %s174 = scalar_select %p171, %s172, %s173
      %p177 = pneg %p171
      %p178 = scmp.eq.s32.totalorder %s20, 7
      %p179 = por %p177, %p178
      %p180 = scmp.ne.s32.totalorder %s172, %s175
      %p181 = scmp.eq.s32.totalorder %s20, 0
      %p182 = por %p180, %p181
      %p183 = scmp.ne.s32.totalorder %s172, %s175
      %p184 = scmp.eq.s32.totalorder %s25, 7
      %p185 = por %p183, %p184
      %p186 = scmp.ne.s32.totalorder %s175, %s176
      %p187 = scmp.eq.s32.totalorder %s25, 0
      %p188 = por %p186, %p187
      %p189 = scmp.ne.s32.totalorder %s175, %s176
      %p190 = scmp.eq.s32.totalorder %s26, 7
      %p191 = por %p189, %p190
      %p193 = scmp.ne.s32.totalorder %s176, %s192
      %p194 = scmp.eq.s32.totalorder %s26, 0
      %p195 = por %p193, %p194
      %s196 = ssub.s32 %s28, %s35
      %p197 = scmp.eq.s32.totalorder %s196, 0
      %s199 = sadd.s32 %s198, 1
      %s200 = scalar_select %p197, %s198, %s199
      %p203 = pneg %p197
      %p204 = scmp.eq.s32.totalorder %s20, 7
      %p205 = por %p203, %p204
      %p206 = scmp.ne.s32.totalorder %s198, %s201
      %p207 = scmp.eq.s32.totalorder %s20, 0
      %p208 = por %p206, %p207
      %p209 = scmp.ne.s32.totalorder %s198, %s201
      %p210 = scmp.eq.s32.totalorder %s25, 7
      %p211 = por %p209, %p210
      %p212 = scmp.ne.s32.totalorder %s201, %s202
      %p213 = scmp.eq.s32.totalorder %s25, 0
      %p214 = por %p212, %p213
      %p215 = scmp.ne.s32.totalorder %s201, %s202
      %p216 = scmp.eq.s32.totalorder %s26, 7
      %p217 = por %p215, %p216
      %p219 = scmp.ne.s32.totalorder %s202, %s218
      %p220 = scmp.eq.s32.totalorder %s26, 0
      %p221 = por %p219, %p220
      %s222 = ssub.s32 %s28, %s35
      %p223 = scmp.eq.s32.totalorder %s222, 0
      %s225 = sadd.s32 %s224, 1
      %s226 = scalar_select %p223, %s224, %s225
      %p229 = pneg %p223
      %p230 = scmp.eq.s32.totalorder %s20, 7
      %p231 = por %p229, %p230
      %p232 = scmp.ne.s32.totalorder %s224, %s227
      %p233 = scmp.eq.s32.totalorder %s20, 0
      %p234 = por %p232, %p233
      %p235 = scmp.ne.s32.totalorder %s224, %s227
      %p236 = scmp.eq.s32.totalorder %s25, 7
      %p237 = por %p235, %p236
      %p238 = scmp.ne.s32.totalorder %s227, %s228
      %p239 = scmp.eq.s32.totalorder %s25, 0
      %p240 = por %p238, %p239
      %p241 = scmp.ne.s32.totalorder %s227, %s228
      %p242 = scmp.eq.s32.totalorder %s26, 7
      %p243 = por %p241, %p242
      %p245 = scmp.ne.s32.totalorder %s228, %s244
      %p246 = scmp.eq.s32.totalorder %s26, 0
      %p247 = por %p245, %p246
      %s248 = ssub.s32 %s28, %s35
      %p249 = scmp.eq.s32.totalorder %s248, 0
      %s251 = sadd.s32 %s250, 1
      %s252 = scalar_select %p249, %s250, %s251
      %p255 = pneg %p249
      %p256 = scmp.eq.s32.totalorder %s20, 7
      %p257 = por %p255, %p256
      %p258 = scmp.ne.s32.totalorder %s250, %s253
      %p259 = scmp.eq.s32.totalorder %s20, 0
      %p260 = por %p258, %p259
      %p261 = scmp.ne.s32.totalorder %s250, %s253
      %p262 = scmp.eq.s32.totalorder %s25, 7
      %p263 = por %p261, %p262
      %p264 = scmp.ne.s32.totalorder %s253, %s254
      %p265 = scmp.eq.s32.totalorder %s25, 0
      %p266 = por %p264, %p265
      %p267 = scmp.ne.s32.totalorder %s253, %s254
      %p268 = scmp.eq.s32.totalorder %s26, 7
      %p269 = por %p267, %p268
      %p271 = scmp.ne.s32.totalorder %s254, %s270
      %p272 = scmp.eq.s32.totalorder %s26, 0
      %p273 = por %p271, %p272
      %s274 = ssub.s32 %s28, %s35
      %p275 = scmp.eq.s32.totalorder %s274, 0
      %s277 = sadd.s32 %s276, 1
      %s278 = scalar_select %p275, %s276, %s277
      %p281 = pneg %p275
      %p282 = scmp.eq.s32.totalorder %s20, 7
      %p283 = por %p281, %p282
      %p284 = scmp.ne.s32.totalorder %s276, %s279
      %p285 = scmp.eq.s32.totalorder %s20, 0
      %p286 = por %p284, %p285
      %p287 = scmp.ne.s32.totalorder %s276, %s279
      %p288 = scmp.eq.s32.totalorder %s25, 7
      %p289 = por %p287, %p288
      %p290 = scmp.ne.s32.totalorder %s279, %s280
      %p291 = scmp.eq.s32.totalorder %s25, 0
      %p292 = por %p290, %p291
      %p293 = scmp.ne.s32.totalorder %s279, %s280
      %p294 = scmp.eq.s32.totalorder %s26, 7
      %p295 = por %p293, %p294
      %p297 = scmp.ne.s32.totalorder %s280, %s296
      %p298 = scmp.eq.s32.totalorder %s26, 0
      %p299 = por %p297, %p298
      %s301 = sadd.s32 %s300, 1
      %p304 = scmp.eq.s32.totalorder %s20, 7
      %p305 = scmp.ne.s32.totalorder %s300, %s302
      %p306 = scmp.eq.s32.totalorder %s20, 0
      %p307 = por %p305, %p306
      %p308 = scmp.ne.s32.totalorder %s300, %s302
      %p309 = scmp.eq.s32.totalorder %s25, 7
      %p310 = por %p308, %p309
      %p311 = scmp.ne.s32.totalorder %s302, %s303
      %p312 = scmp.eq.s32.totalorder %s25, 0
      %p313 = por %p311, %p312
      %p314 = scmp.ne.s32.totalorder %s302, %s303
      %p315 = scmp.eq.s32.totalorder %s26, 7
      %p316 = por %p314, %p315
      %p318 = scmp.ne.s32.totalorder %s303, %s317
      %p319 = scmp.eq.s32.totalorder %s26, 0
      %p320 = por %p318, %p319
      %s321 = ssub.s32 %s27, %s39
      %p322 = scmp.eq.s32.totalorder %s321, 0
      %s324 = sadd.s32 %s323, 1
      %s325 = scalar_select %p322, %s323, %s324
      %p328 = pneg %p322
      %p329 = scmp.eq.s32.totalorder %s20, 7
      %p330 = por %p328, %p329
      %p331 = scmp.ne.s32.totalorder %s323, %s326
      %p332 = scmp.eq.s32.totalorder %s20, 0
      %p333 = por %p331, %p332
      %p334 = scmp.ne.s32.totalorder %s323, %s326
      %p335 = scmp.eq.s32.totalorder %s25, 7
      %p336 = por %p334, %p335
      %p337 = scmp.ne.s32.totalorder %s326, %s327
      %p338 = scmp.eq.s32.totalorder %s25, 0
      %p339 = por %p337, %p338
      %p340 = scmp.ne.s32.totalorder %s326, %s327
      %p341 = scmp.eq.s32.totalorder %s26, 7
      %p342 = por %p340, %p341
      %p344 = scmp.ne.s32.totalorder %s327, %s343
      %p345 = scmp.eq.s32.totalorder %s26, 0
      %p346 = por %p344, %p345
      %p347 = scmp.le.s32.totalorder 1, %s20
      %p348 = scmp.lt.s32.totalorder %s20, 9
      %p349 = pnand %p347, %p348
      %p350 = pneg %p349
      // Predicated region
      $region9: #{tpu_custom_call.1} parent=5 // pred_check
        _
      $region10: #{tpu_custom_call.1} parent=5 // pred_check_branch
        %352 = sbr.rel (%p349) target = $region12
      $region11: #{tpu_custom_call.1} parent=5 // pred_region
        %s353 = ssub.s32 %s20, 1
        // Predicated region
        $region13: #{tpu_custom_call.1} parent=11 // pred_check
          %p354 = pneg %p313
        $region14: #{tpu_custom_call.1} parent=11 // pred_check_branch
          %356 = sbr.rel (%p354) target = $region16
        $region15: #{tpu_custom_call.1} parent=11 // pred_region
          _
        $region16: #{tpu_custom_call.1} parent=11 // pred_fallthru
          _
      $region12: #{tpu_custom_call.1} parent=5 // pred_fallthru
        _
      %p357 = scmp.lt.s32.totalorder %s20, 8
      // Predicated region
      $region17: #{tpu_custom_call.1} parent=5 // pred_check
        %p358 = pneg %p357
      $region18: #{tpu_custom_call.1} parent=5 // pred_check_branch
        %360 = sbr.rel (%p358) target = $region20
      $region19: #{tpu_custom_call.1} parent=5 // pred_region
        // Predicated region
        $region21: #{tpu_custom_call.1} parent=19 // pred_check
          %p361 = pneg %p52
        $region22: #{tpu_custom_call.1} parent=19 // pred_check_branch
          %363 = sbr.rel (%p361) target = $region24
        $region23: #{tpu_custom_call.1} parent=19 // pred_region
          %p364 = scmp.lt.s32.totalorder %s27, 1
          %s365 = scalar_select %p364, %s27, 1
          %s366 = smul.addr %s365, 4
          %s367 = scalar_lea.vmem %s0, %s366
        $region24: #{tpu_custom_call.1} parent=19 // pred_fallthru
          _
        // Predicated region
        $region25: #{tpu_custom_call.1} parent=19 // pred_check
          %p368 = pneg %p78
        $region26: #{tpu_custom_call.1} parent=19 // pred_check_branch
          %370 = sbr.rel (%p368) target = $region28
        $region27: #{tpu_custom_call.1} parent=19 // pred_region
          %p371 = scmp.lt.s32.totalorder %s27, 1
          %s372 = scalar_select %p371, %s27, 1
          %s373 = smul.addr %s372, 4
          %s374 = scalar_lea.vmem %s1, %s373
        $region28: #{tpu_custom_call.1} parent=19 // pred_fallthru
          _
        // Predicated region
        $region29: #{tpu_custom_call.1} parent=19 // pred_check
          %p375 = pneg %p104
        $region30: #{tpu_custom_call.1} parent=19 // pred_check_branch
          %377 = sbr.rel (%p375) target = $region32
        $region31: #{tpu_custom_call.1} parent=19 // pred_region
          %p378 = scmp.lt.s32.totalorder %s27, 1
          %s379 = scalar_select %p378, %s27, 1
          %s380 = smul.addr %s379, 4
          %s381 = scalar_lea.vmem %s2, %s380
        $region32: #{tpu_custom_call.1} parent=19 // pred_fallthru
          _
        // Predicated region
        $region33: #{tpu_custom_call.1} parent=19 // pred_check
          %p382 = pneg %p130
        $region34: #{tpu_custom_call.1} parent=19 // pred_check_branch
          %384 = sbr.rel (%p382) target = $region36
        $region35: #{tpu_custom_call.1} parent=19 // pred_region
          %p385 = scmp.lt.s32.totalorder %s28, 3
          %s386 = scalar_select %p385, %s28, 3
          %s387 = smul.addr %s386, 4
          %s388 = smul.addr %s387, 4
          %s389 = scalar_lea.vmem %s3, %s388
        $region36: #{tpu_custom_call.1} parent=19 // pred_fallthru
          _
        // Predicated region
        $region37: #{tpu_custom_call.1} parent=19 // pred_check
          %p390 = pneg %p156
        $region38: #{tpu_custom_call.1} parent=19 // pred_check_branch
          %392 = sbr.rel (%p390) target = $region40
        $region39: #{tpu_custom_call.1} parent=19 // pred_region
          %p393 = scmp.lt.s32.totalorder %s28, 3
          %s394 = scalar_select %p393, %s28, 3
          %s395 = smul.addr %s394, 4
          %s396 = smul.addr %s395, 4
          %s397 = scalar_lea.vmem %s4, %s396
        $region40: #{tpu_custom_call.1} parent=19 // pred_fallthru
          _
        // Predicated region
        $region41: #{tpu_custom_call.1} parent=19 // pred_check
          %p398 = pneg %p182
        $region42: #{tpu_custom_call.1} parent=19 // pred_check_branch
          %400 = sbr.rel (%p398) target = $region44
        $region43: #{tpu_custom_call.1} parent=19 // pred_region
          %p401 = scmp.lt.s32.totalorder %s28, 3
          %s402 = scalar_select %p401, %s28, 3
          %s403 = smul.addr %s402, 4
          %s404 = smul.addr %s403, 4
          %s405 = scalar_lea.vmem %s5, %s404
        $region44: #{tpu_custom_call.1} parent=19 // pred_fallthru
          _
        // Predicated region
        $region45: #{tpu_custom_call.1} parent=19 // pred_check
          %p406 = pneg %p208
        $region46: #{tpu_custom_call.1} parent=19 // pred_check_branch
          %408 = sbr.rel (%p406) target = $region48
        $region47: #{tpu_custom_call.1} parent=19 // pred_region
          %p409 = scmp.lt.s32.totalorder %s28, 3
          %s410 = scalar_select %p409, %s28, 3
          %s411 = scalar_lea.vmem %s6, %s410
        $region48: #{tpu_custom_call.1} parent=19 // pred_fallthru
          _
        // Predicated region
        $region49: #{tpu_custom_call.1} parent=19 // pred_check
          %p412 = pneg %p234
        $region50: #{tpu_custom_call.1} parent=19 // pred_check_branch
          %414 = sbr.rel (%p412) target = $region52
        $region51: #{tpu_custom_call.1} parent=19 // pred_region
          %p415 = scmp.lt.s32.totalorder %s28, 3
          %s416 = scalar_select %p415, %s28, 3
          %s417 = scalar_lea.vmem %s7, %s416
        $region52: #{tpu_custom_call.1} parent=19 // pred_fallthru
          _
        // Predicated region
        $region53: #{tpu_custom_call.1} parent=19 // pred_check
          %p418 = pneg %p260
        $region54: #{tpu_custom_call.1} parent=19 // pred_check_branch
          %420 = sbr.rel (%p418) target = $region56
        $region55: #{tpu_custom_call.1} parent=19 // pred_region
          %p421 = scmp.lt.s32.totalorder %s28, 3
          %s422 = scalar_select %p421, %s28, 3
          %s423 = scalar_lea.vmem %s8, %s422
        $region56: #{tpu_custom_call.1} parent=19 // pred_fallthru
          _
        // Predicated region
        $region57: #{tpu_custom_call.1} parent=19 // pred_check
          %p424 = pneg %p286
        $region58: #{tpu_custom_call.1} parent=19 // pred_check_branch
          %426 = sbr.rel (%p424) target = $region60
        $region59: #{tpu_custom_call.1} parent=19 // pred_region
          %p427 = scmp.lt.s32.totalorder %s28, 3
          %s428 = scalar_select %p427, %s28, 3
          %s429 = smul.addr %s428, 4
          %s430 = scalar_lea.vmem %s9, %s429
        $region60: #{tpu_custom_call.1} parent=19 // pred_fallthru
          _
      $region20: #{tpu_custom_call.1} parent=5 // pred_fallthru
        _
      %p431 = scmp.le.s32.totalorder 1, %s20
      %p432 = scmp.lt.s32.totalorder %s20, 9
      %p433 = pnand %p431, %p432
      %p434 = pneg %p433
      // Predicated region
      $region61: #{tpu_custom_call.1} parent=5 // pred_check
        _
      $region62: #{tpu_custom_call.1} parent=5 // pred_check_branch
        %436 = sbr.rel (%p433) target = $region64
      $region63: #{tpu_custom_call.1} parent=5 // pred_region
        %s437 = ssub.s32 %s20, 1
        %p438 = scmp.lt.s32.totalorder %s29, 1
        %s439 = scalar_select %p438, %s29, 1
        %s440 = smul.addr %s439, 4
        %s441 = scalar_lea.vmem %s0, %s440
        %p442 = pneg %p58
        %p443 = pneg %p55
        %p444 = scmp.lt.s32.totalorder %s29, 1
        %s445 = scalar_select %p444, %s29, 1
        %s446 = smul.addr %s445, 4
        %s447 = scalar_lea.vmem %s1, %s446
        %p448 = pneg %p84
        %p449 = pneg %p81
        %p450 = scmp.lt.s32.totalorder %s29, 1
        %s451 = scalar_select %p450, %s29, 1
        %s452 = smul.addr %s451, 4
        %s453 = scalar_lea.vmem %s2, %s452
        %p454 = pneg %p110
        %p455 = pneg %p107
        %p456 = scmp.lt.s32.totalorder %s30, 3
        %s457 = scalar_select %p456, %s30, 3
        %s458 = smul.addr %s457, 4
        %s459 = smul.addr %s458, 4
        %s460 = scalar_lea.vmem %s3, %s459
        %p461 = pneg %p136
        %p462 = pneg %p133
        %p463 = scmp.lt.s32.totalorder %s30, 3
        %s464 = scalar_select %p463, %s30, 3
        %s465 = smul.addr %s464, 4
        %s466 = smul.addr %s465, 4
        %s467 = scalar_lea.vmem %s4, %s466
        %p468 = pneg %p162
        %p469 = pneg %p159
        %p470 = scmp.lt.s32.totalorder %s30, 3
        %s471 = scalar_select %p470, %s30, 3
        %s472 = smul.addr %s471, 4
        %s473 = smul.addr %s472, 4
        %s474 = scalar_lea.vmem %s5, %s473
        %p475 = pneg %p188
        %p476 = pneg %p185
        %p477 = scmp.lt.s32.totalorder %s30, 3
        %s478 = scalar_select %p477, %s30, 3
        %s479 = scalar_lea.vmem %s6, %s478
        %p480 = pneg %p214
        %p481 = pneg %p211
        %p482 = scmp.lt.s32.totalorder %s30, 3
        %s483 = scalar_select %p482, %s30, 3
        %s484 = scalar_lea.vmem %s7, %s483
        %p485 = pneg %p240
        %p486 = pneg %p237
        %p487 = scmp.lt.s32.totalorder %s30, 3
        %s488 = scalar_select %p487, %s30, 3
        %s489 = scalar_lea.vmem %s8, %s488
        %p490 = pneg %p266
        %p491 = pneg %p263
        %p492 = scmp.lt.s32.totalorder %s30, 3
        %s493 = scalar_select %p492, %s30, 3
        %s494 = smul.addr %s493, 4
        %s495 = scalar_lea.vmem %s9, %s494
        %p496 = pneg %p292
        %p497 = pneg %p289
        %p498 = pneg %p313
        %p499 = pneg %p310
        %p500 = pneg %p339
        %p501 = pneg %p336
        %s502 = sand.u32 %s326, 1
        %s503 = scalar_lea.sflag [#allocation3], %s502
        %s504 = sand.u32 %s326, 1
        %s505 = smul.addr %s504, 8
        %s506 = scalar_lea.vmem [#allocation2], %s505
        %p507 = scmp.lt.s32.totalorder %s29, 1
        %s508 = scalar_select %p507, %s29, 1
        %s509 = smul.addr %s508, 4
        %s510 = scalar_lea.vmem %s0, %s509
        %p511 = scmp.lt.s32.totalorder %s29, 1
        %s512 = scalar_select %p511, %s29, 1
        %s513 = smul.addr %s512, 4
        %s514 = scalar_lea.vmem %s1, %s513
        %p515 = scmp.lt.s32.totalorder %s29, 1
        %s516 = scalar_select %p515, %s29, 1
        %s517 = smul.addr %s516, 4
        %s518 = scalar_lea.vmem %s2, %s517
        %p519 = scmp.lt.s32.totalorder %s30, 3
        %s520 = scalar_select %p519, %s30, 3
        %s521 = smul.addr %s520, 4
        %s522 = smul.addr %s521, 4
        %s523 = scalar_lea.vmem %s3, %s522
        %p524 = scmp.lt.s32.totalorder %s30, 3
        %s525 = scalar_select %p524, %s30, 3
        %s526 = smul.addr %s525, 4
        %s527 = smul.addr %s526, 4
        %s528 = scalar_lea.vmem %s4, %s527
        %p529 = scmp.lt.s32.totalorder %s30, 3
        %s530 = scalar_select %p529, %s30, 3
        %s531 = smul.addr %s530, 4
        %s532 = smul.addr %s531, 4
        %s533 = scalar_lea.vmem %s5, %s532
        %p534 = scmp.lt.s32.totalorder %s30, 3
        %s535 = scalar_select %p534, %s30, 3
        %s536 = scalar_lea.vmem %s6, %s535
        %p537 = scmp.lt.s32.totalorder %s30, 3
        %s538 = scalar_select %p537, %s30, 3
        %s539 = scalar_lea.vmem %s7, %s538
        %p540 = scmp.lt.s32.totalorder %s30, 3
        %s541 = scalar_select %p540, %s30, 3
        %s542 = scalar_lea.vmem %s8, %s541
        %p543 = scmp.lt.s32.totalorder %s30, 3
        %s544 = scalar_select %p543, %s30, 3
        %s545 = smul.addr %s544, 4
        %s546 = scalar_lea.vmem %s9, %s545
        %v548 = vld [vmem:[%s510] sm:$0xf]
        %v549 = vld [vmem:[%s514] sm:$0xf]
        %v550 = vld [vmem:[%s518] sm:$0xf]
        %v551 = vld [vmem:[%s523] sm:$0xf]
        %v552 = vld [vmem:[%s523 + $0x4] sm:$0xf]
        %v553 = vld [vmem:[%s523 + $0x8] sm:$0xf]
        %v554 = vld [vmem:[%s523 + $0xc] sm:$0xf]
        %v555 = vld [vmem:[%s536] sm:$0x1]
        %v557 = vperm.slane %v555, 0
        %v563 = vunpack.c.l.b16 %v551
        %v564 = vunpack.c.l.b16 %v552
        %v565 = vunpack.c.l.b16 %v553
        %v566 = vunpack.c.l.b16 %v554
        %v567 = vpack.c.b16 %v564, %v563
        %v568 = vpack.c.b16 %v566, %v565
        %vm571 = vcmask 261120
        %v573 = vsel %vm571, %v548, 0
        %575 = vmatpush.bf16.msra.mxu0 0
        %576 = vmatpush.bf16.msra.mxu0 0
        %577 = vmatpush.bf16.msra.mxu0 0
        %578 = vmatpush.bf16.msra.mxu0 0
        %579 = vmatpush.bf16.msra.mxu0 0
        %580 = vmatpush.bf16.msra.mxu0 0
        %581 = vmatpush.bf16.msra.mxu0 %v568
        %582 = vmatpush.bf16.msra.mxu0 %v567
        %583 = vmatmul.bf16.gmra.mxu0 %v573
        %v584 = vpop.f32.mrf.mxu0
        %v585 = vadd.f32 %v557, %v584
        %v586 = vpop.f32.mrf.mxu0
        %587 = vdwg.mxu0
        %v588 = vld [vmem:[%s528] sm:$0xf]
        %v589 = vld [vmem:[%s528 + $0x4] sm:$0xf]
        %v590 = vld [vmem:[%s528 + $0x8] sm:$0xf]
        %v591 = vld [vmem:[%s528 + $0xc] sm:$0xf]
        %v592 = vld [vmem:[%s539] sm:$0x1]
        %v594 = vperm.slane %v592, 0
        %v600 = vunpack.c.l.b16 %v588
        %v601 = vunpack.c.l.b16 %v589
        %v602 = vunpack.c.l.b16 %v590
        %v603 = vunpack.c.l.b16 %v591
        %v604 = vpack.c.b16 %v601, %v600
        %v605 = vpack.c.b16 %v603, %v602
        %v609 = vsel %vm571, %v549, 0
        %611 = vmatpush.bf16.msra.mxu0 0
        %612 = vmatpush.bf16.msra.mxu0 0
        %613 = vmatpush.bf16.msra.mxu0 0
        %614 = vmatpush.bf16.msra.mxu0 0
        %615 = vmatpush.bf16.msra.mxu0 0
        %616 = vmatpush.bf16.msra.mxu0 0
        %617 = vmatpush.bf16.msra.mxu0 %v605
        %618 = vmatpush.bf16.msra.mxu0 %v604
        %619 = vmatmul.bf16.gmra.mxu0 %v609
        %v620 = vpop.f32.mrf.mxu0
        %v621 = vadd.f32 %v594, %v620
        %v622 = vpop.f32.mrf.mxu0
        %623 = vdwg.mxu0
        %v624 = vld [vmem:[%s533] sm:$0xf]
        %v625 = vld [vmem:[%s533 + $0x4] sm:$0xf]
        %v626 = vld [vmem:[%s533 + $0x8] sm:$0xf]
        %v627 = vld [vmem:[%s533 + $0xc] sm:$0xf]
        %v628 = vld [vmem:[%s542] sm:$0x1]
        %v630 = vperm.slane %v628, 0
        %v636 = vunpack.c.l.b16 %v624
        %v637 = vunpack.c.l.b16 %v625
        %v638 = vunpack.c.l.b16 %v626
        %v639 = vunpack.c.l.b16 %v627
        %v640 = vpack.c.b16 %v637, %v636
        %v641 = vpack.c.b16 %v639, %v638
        %v645 = vsel %vm571, %v550, 0
        %647 = vmatpush.bf16.msra.mxu0 0
        %648 = vmatpush.bf16.msra.mxu0 0
        %649 = vmatpush.bf16.msra.mxu0 0
        %650 = vmatpush.bf16.msra.mxu0 0
        %651 = vmatpush.bf16.msra.mxu0 0
        %652 = vmatpush.bf16.msra.mxu0 0
        %653 = vmatpush.bf16.msra.mxu0 %v641
        %654 = vmatpush.bf16.msra.mxu0 %v640
        %655 = vmatmul.bf16.gmra.mxu0 %v645
        %v656 = vpop.f32.mrf.mxu0
        %v657 = vadd.f32 %v630, %v656
        %v658 = vpop.f32.mrf.mxu0
        %659 = vdwg.mxu0
        %v660 = vpack.c.bf16 %v585, %v585
        %v661 = vpack.c.bf16 %v621, %v621
        %vm662 = vcmask 64512
        %v664 = vsel %vm662, %v660, 0
        %v667 = vsel %vm662, %v661, 0
        %669 = vmatpush.bf16.xpose.msra.mxu0 0
        %670 = vmatpush.bf16.xpose.msra.mxu0 0
        %671 = vmatpush.bf16.xpose.msra.mxu0 0
        %672 = vmatpush.bf16.xpose.msra.mxu0 0
        %673 = vmatpush.bf16.xpose.msra.mxu0 0
        %674 = vmatpush.bf16.xpose.msra.mxu0 0
        %675 = vmatpush.bf16.xpose.msra.mxu0 0
        %676 = vmatpush.bf16.xpose.msra.mxu0 %v667
        %677 = vmatmul.bf16.gmra.mxu0 %v664
        %v678 = vpop.f32.mrf.mxu0
        %v679 = vadd.f32 0.0, %v678
        %v680 = vpop.f32.mrf.mxu0
        %681 = vdwg.mxu0
        %v682 = vmul.f32 %v679, 0.35355338
        %v683 = vsel %vm662, %v682, -inf
        %684 = vmax.xlane.f32.xlu0 %v683
        %v685 = vpop.xlane.xlu0 %684
        %v686 = vsub.f32 %v682, %v685
        %v687 = vmul.f32 %v686, 1.442695
        %v688 = vpow.pop %v687
        %v689 = vsel %vm662, %v688, 0.0
        %690 = vadd.xlane.f32.xlu0 %v689
        %v691 = vpop.xlane.xlu0 %690
        %v692 = vrcp.pop %v691
        %v693 = vmul.f32 %v688, %v692
        %v694 = vpack.c.bf16 %v693, %v693
        %v695 = vpack.c.bf16 %v657, %v657
        %v697 = vsel %vm662, %v694, 0
        %vm699 = vcmask 1043456
        %v701 = vsel %vm699, %v695, 0
        %703 = vmatpush.bf16.msra.mxu0 0
        %704 = vmatpush.bf16.msra.mxu0 0
        %705 = vmatpush.bf16.msra.mxu0 0
        %706 = vmatpush.bf16.msra.mxu0 0
        %707 = vmatpush.bf16.msra.mxu0 0
        %708 = vmatpush.bf16.msra.mxu0 0
        %709 = vmatpush.bf16.msra.mxu0 0
        %710 = vmatpush.bf16.msra.mxu0 %v701
        %711 = vmatmul.bf16.gmra.mxu0 %v697
        %v712 = vpop.f32.mrf.mxu0
        %v713 = vadd.f32 0.0, %v712
        %v714 = vpop.f32.mrf.mxu0
        %715 = vdwg.mxu0
        %v716 = vpack.c.bf16 %v713, %v713
        %v717 = vld [vmem:[%s546] sm:$0xf]
        %v719 = vsel %vm662, %v716, 0
        %v722 = vsel %vm699, %v717, 0
        %724 = vmatpush.bf16.msra.mxu0 0
        %725 = vmatpush.bf16.msra.mxu0 0
        %726 = vmatpush.bf16.msra.mxu0 0
        %727 = vmatpush.bf16.msra.mxu0 0
        %728 = vmatpush.bf16.msra.mxu0 0
        %729 = vmatpush.bf16.msra.mxu0 0
        %730 = vmatpush.bf16.msra.mxu0 0
        %731 = vmatpush.bf16.msra.mxu0 %v722
        %732 = vmatmul.bf16.gmra.mxu0 %v719
        %v733 = vpop.f32.mrf.mxu0
        %v734 = vadd.f32 0.0, %v733
        %v735 = vpop.f32.mrf.mxu0
        %736 = vdwg.mxu0
        %p737 = scmp.eq.s32.totalorder %s30, 0
        // Predicated region
        $region65: #{tpu_custom_call.1} parent=63 // pred_check
          %p738 = pneg %p737
        $region66: #{tpu_custom_call.1} parent=63 // pred_check_branch
          %740 = sbr.rel (%p738) target = $region68
        $region67: #{tpu_custom_call.1} parent=63 // pred_region
          %v741 = vld [vmem:[%s10] sm:$0x1]
          %v743 = vperm.slane %v741, 0
          %v745 = vadd.f32 %v734, %v743
          %746 = vst.msk [vmem:[%s506] sm:$0xff] %vm571, %v745
        $region68: #{tpu_custom_call.1} parent=63 // pred_fallthru
          _
        %p747 = scmp.ne.s32.totalorder %s30, 0
        // Predicated region
        $region69: #{tpu_custom_call.1} parent=63 // pred_check
          %p748 = pneg %p747
        $region70: #{tpu_custom_call.1} parent=63 // pred_check_branch
          %750 = sbr.rel (%p748) target = $region72
        $region71: #{tpu_custom_call.1} parent=63 // pred_region
          %v751 = vld [vmem:[%s506] sm:$0xff]
          %v752 = vadd.f32 %v751, %v734
          %753 = vst.msk [vmem:[%s506] sm:$0xff] %vm571, %v752
        $region72: #{tpu_custom_call.1} parent=63 // pred_fallthru
          _
        %s754 = sand.u32 %s326, 1
        %s755 = scalar_lea.sflag [#allocation3], %s754
        %s756 = sand.u32 %s326, 1
        %s757 = smul.addr %s756, 8
        %s758 = scalar_lea.vmem [#allocation2], %s757
        // Predicated region
        $region73: #{tpu_custom_call.1} parent=63 // pred_check
          %p759 = pneg %p336
        $region74: #{tpu_custom_call.1} parent=63 // pred_check_branch
          %761 = sbr.rel (%p759) target = $region76
        $region75: #{tpu_custom_call.1} parent=63 // pred_region
          %763 = vsyncadd %s755, 0
          %s764 = smul.addr %s29, 8
          %s765 = scalar_lea.hbm %s11, %s764
          %s767 = sshll.u32 %s758, 4
          %s768 = int_to_ptr.vmem [resolvable:$true] %s767
          %s769 = sshll.u32 %s765, 4
          %s770 = int_to_ptr.hbm [resolvable:$true] %s769
          %772 = dma.vmem_to_hbm [thread:$0]  %s768, 128, %s770, %s755
        $region76: #{tpu_custom_call.1} parent=63 // pred_fallthru
          _
      $region64: #{tpu_custom_call.1} parent=5 // pred_fallthru
        _
      %p773 = scmp.le.s32.totalorder 2, %s20
      // Predicated region
      $region77: #{tpu_custom_call.1} parent=5 // pred_check
        %p774 = pneg %p773
      $region78: #{tpu_custom_call.1} parent=5 // pred_check_branch
        %776 = sbr.rel (%p774) target = $region80
      $region79: #{tpu_custom_call.1} parent=5 // pred_region
        %s777 = ssub.s32 %s20, 2
        // Predicated region
        $region81: #{tpu_custom_call.1} parent=79 // pred_check
          %p778 = pneg %p342
        $region82: #{tpu_custom_call.1} parent=79 // pred_check_branch
          %780 = sbr.rel (%p778) target = $region84
        $region83: #{tpu_custom_call.1} parent=79 // pred_region
          %s781 = sand.u32 %s327, 1
          %s782 = scalar_lea.sflag [#allocation3], %s781
          %s783 = sand.u32 %s327, 1
          %s784 = smul.addr %s783, 8
          %s785 = scalar_lea.vmem [#allocation2], %s784
          %787 = dma.done %s782, 128
        $region84: #{tpu_custom_call.1} parent=79 // pred_fallthru
          _
      $region80: #{tpu_custom_call.1} parent=5 // pred_fallthru
        _
    $region6: #{tpu_custom_call.1} parent=1 // loop_footer
      %s24 = sadd.s32 1, %s20
    $region7: #{tpu_custom_call.1} parent=1 // loop_footer_branch
      %19 = sbr.rel target = $region3
    $region8: #{tpu_custom_call.1} parent=1 // loop_exit
      _
    %788 = vsyncpa [#allocation3], 1
    %s789 = scalar_lea.sflag [#allocation3], 1
    %790 = vsyncpa %s789, 1

</llo_original>
